<compile_context>
chip_gen: v5e
topology: v5e:2x2
jax: 0.10.0
libtpu: 0.0.40
codegen_flags: <defaults>
</compile_context>

<pallas_src>
import functools

import jax
import jax.numpy as jnp
import numpy as np
from jax.experimental import pallas as pl
from jax.experimental.pallas import tpu as pltpu


def _round_up(x: int, m: int) -> int:
    return ((x + m - 1) // m) * m


def _cdiv(a: int, b: int) -> int:
    return -(-a // b)


def _make_reducer_kernel(m_total: int, tile_m: int, use_scratch: bool,
                         mode: str, idx_resident: bool, hot_dtype):
    """Kernel body for a static config.  Grid is (N tiles, D tiles, M tiles)."""
    ragged = (m_total % tile_m) != 0   # static: mask only when the last M tile is ragged

    def kernel(idx_ref, x_ref, o_ref, *scratch):
        # idx_ref : (1, M_pad) or (1, tile_m) int32, lane-major destination rows
        # x_ref   : (tile_m, tile_d) input dtype
        # o_ref   : (tile_n, tile_d) output block (resident across the M axis)
        # scratch : optional (tile_n, tile_d) f32 accumulator
        acc_ref = scratch[0] if use_scratch else o_ref
        n_step = pl.program_id(0)
        m_step = pl.program_id(2)
        tile_n = acc_ref.shape[0]

        # --- idx tile (lane-major) -------------------------------------------
        if idx_resident:
            m_start = pl.multiple_of(m_step * tile_m, tile_m)
            idx = idx_ref[:, pl.ds(m_start, tile_m)]        # (1, tile_m)
        else:
            idx = idx_ref[...]                              # (1, tile_m)

        # --- transposed one-hot: hot[j, i] = (idx[i] == j + n_step*tile_n) ----
        idx_local = idx - n_step * tile_n                   # (1, tile_m), cheap
        row_ids = jax.lax.broadcasted_iota(jnp.int32, (tile_n, tile_m), 0)
        hot = (row_ids == idx_local).astype(hot_dtype)      # (tile_n, tile_m)

        # --- source rows -------------------------------------------------------
        x = x_ref[...]
        if ragged:
            # Zero out-of-bounds rows (pad region holds undefined data; 0*NaN=NaN
            # would otherwise poison whole output columns).
            sub_ids = jax.lax.broadcasted_iota(jnp.int32, (tile_m, 1), 0)
            in_bounds = (sub_ids + m_step * tile_m) < m_total
            x = jnp.where(in_bounds, x, jnp.zeros_like(x))

        # --- MXU matmul(s), f32 accumulation -----------------------------------
        if mode == "hilo":           # f32 / f16 inputs via two bf16 passes
            xf = x.astype(jnp.float32)
            x_hi = xf.astype(jnp.bfloat16)
            x_lo = (xf - x_hi.astype(jnp.float32)).astype(jnp.bfloat16)
            contrib = (jnp.dot(hot, x_hi, preferred_element_type=jnp.float32)
                       + jnp.dot(hot, x_lo, preferred_element_type=jnp.float32))
        elif mode == "bf16":         # bf16 inputs, single full-rate pass
            contrib = jnp.dot(hot, x, preferred_element_type=jnp.float32)
        else:                        # generic fallback (ints etc.), f32 MXU
            contrib = jnp.dot(hot, x.astype(jnp.float32),
                              preferred_element_type=jnp.float32)

        @pl.when(m_step == 0)
        def _():                     # init-by-assign: saves a zero + RMW pass
            acc_ref[...] = contrib.astype(acc_ref.dtype)

        @pl.when(m_step > 0)
        def _():
            acc_ref[...] += contrib.astype(acc_ref.dtype)

        if use_scratch:
            @pl.when(m_step == pl.num_programs(2) - 1)
            def _():
                o_ref[...] = acc_ref[...].astype(o_ref.dtype)

    return kernel


@functools.partial(
    jax.jit,
    static_argnames=("n", "tile_m", "tile_d", "tile_n", "max_resident_idx_bytes"))
def reducer_forward(tensor: jax.Array, idx: jax.Array, n: int,
                    tile_m: int = 512, tile_d: int = 512, tile_n: int = 2048,
                    max_resident_idx_bytes: int = 4 << 20):
    """Pallas equivalent of Reducer(idx, n, 'sum').forward(tensor)."""
    M = tensor.shape[0]
    sub = tensor.shape[1:]
    D = int(np.prod(sub)) if sub else 1
    x2 = tensor.reshape(M, D)
    in_dtype = x2.dtype
    x_itemsize = int(np.dtype(in_dtype).itemsize)
    out_itemsize = x_itemsize

    # ---- MXU path selection -------------------------------------------------
    if in_dtype == jnp.float32:
        mode, use_scratch = "hilo", False       # accumulate in the f32 out block
    elif in_dtype == jnp.bfloat16:
        mode, use_scratch = "bf16", True
    elif in_dtype == jnp.float16:
        mode, use_scratch = "hilo", True
    else:
        mode, use_scratch = "f32", True         # TODO(synk): integer exactness
    hot_dtype = jnp.float32 if mode == "f32" else jnp.bfloat16
    hot_itemsize = 4 if mode == "f32" else 2

    # ---- static tiling --------------------------------------------------------
    # tile_m: MXU contraction depth.  Multiple of 128 so it is lane-dense for the
    # one-hot and satisfies sublane packing (8 f32 / 16 bf16 / 32 int8) of x.
    tile_m_eff = min(_round_up(tile_m, 128), _round_up(M, 128))
    grid_m = _cdiv(M, tile_m_eff)
    m_pad = grid_m * tile_m_eff

    d_pad = _round_up(D, 128)                           # lane-dense output stores
    tile_d_eff = min(_round_up(tile_d, 128), d_pad)

    tile_n_eff = min(_round_up(tile_n, 256), _round_up(n, 256))   # 256x256 MXU

    idx_resident = (m_pad * 4) <= max_resident_idx_bytes
    idx_cols = m_pad if idx_resident else tile_m_eff

    # ---- generation-aware VMEM budget -----------------------------------------
    try:
        vmem_cap = int(pltpu.get_tpu_info().vmem_capacity_bytes)
    except Exception:
        vmem_cap = 64 << 20                             # conservative (v7x-sized)
    budget = max(24 << 20, int(vmem_cap * 0.6))

    def _vmem_usage(tn, td):
        u = 2 * tn * td * out_itemsize                  # output block (dbl-buffered)
        if use_scratch:
            u += tn * td * 4                            # f32 accumulator scratch
        u += 2 * tile_m_eff * td * x_itemsize           # x blocks (dbl-buffered)
        u += tn * tile_m_eff * hot_itemsize             # transposed one-hot temp
        u += tile_m_eff * td * (8 if mode == "hilo" else 0)   # hi/lo temporaries
        u += 2 * idx_cols * 4                           # idx block(s)
        u += 2 << 20                                    # misc headroom
        return u

    while _vmem_usage(tile_n_eff, tile_d_eff) > budget and tile_d_eff > 128:
        tile_d_eff -= 128
    while _vmem_usage(tile_n_eff, tile_d_eff) > budget and tile_n_eff > 256:
        tile_n_eff = max(256, _round_up(tile_n_eff // 2, 256))

    n_pad = _round_up(n, tile_n_eff)
    grid_n = n_pad // tile_n_eff
    grid_d = _cdiv(d_pad, tile_d_eff)

    # v7x has 2 TensorCores sharded over the "parallel" axes: ensure both have
    # work when the feature dim allows it.  Harmless on 1-TC v5e/v6e.
    if grid_n * grid_d == 1 and d_pad >= 256:
        tile_d_eff = _round_up(_cdiv(d_pad, 2), 128)
        grid_d = _cdiv(d_pad, tile_d_eff)

    # ---- operand padding (cheap, one-off) --------------------------------------
    idx_i32 = idx.astype(jnp.int32).reshape(M)
    if m_pad != M:
        idx_i32 = jnp.pad(idx_i32, (0, m_pad - M), constant_values=-1)
    idx_i32 = idx_i32.reshape(1, m_pad)                 # lane-major
    if d_pad != D:
        x2 = jnp.pad(x2, ((0, 0), (0, d_pad - D)))

    # ---- specs / kernel ---------------------------------------------------------
    if idx_resident:
        idx_spec = pl.BlockSpec((1, m_pad), lambda nn, d, m: (0, 0))      # load once
    else:
        idx_spec = pl.BlockSpec((1, tile_m_eff), lambda nn, d, m: (0, m))
    x_spec = pl.BlockSpec((tile_m_eff, tile_d_eff), lambda nn, d, m: (m, d))
    out_spec = pl.BlockSpec((tile_n_eff, tile_d_eff), lambda nn, d, m: (nn, d))
    scratch_shapes = ([pltpu.VMEM((tile_n_eff, tile_d_eff), jnp.float32)]
                      if use_scratch else [])

    kernel = _make_reducer_kernel(M, tile_m_eff, use_scratch, mode,
                                  idx_resident, hot_dtype)

    usage = _vmem_usage(tile_n_eff, tile_d_eff)
    vmem_limit = int(min(max(usage + (8 << 20), 32 << 20),
                         max(32 << 20, int(vmem_cap * 0.85))))

    n_passes = 2 if mode == "hilo" else 1
    flops = 2 * grid_n * grid_d * grid_m * tile_n_eff * tile_m_eff * tile_d_eff * n_passes
    bytes_accessed = (grid_n * m_pad * d_pad * x_itemsize
                      + n_pad * d_pad * out_itemsize + m_pad * 4)
    cost = pl.CostEstimate(flops=flops, transcendentals=0,
                           bytes_accessed=bytes_accessed)

    out = pl.pallas_call(
        kernel,
        out_shape=jax.ShapeDtypeStruct((n_pad, d_pad), in_dtype),
        grid_spec=pltpu.PrefetchScalarGridSpec(
            num_scalar_prefetch=0,
            grid=(grid_n, grid_d, grid_m),
            in_specs=[idx_spec, x_spec],
            out_specs=out_spec,
            scratch_shapes=scratch_shapes,
        ),
        compiler_params=pltpu.CompilerParams(
            dimension_semantics=("parallel", "parallel", "arbitrary"),
            vmem_limit_bytes=vmem_limit,
        ),
        cost_estimate=cost,
    )(idx_i32, x2)

    if n_pad != n or d_pad != D:
        out = out[:n, :D]
    return out.reshape((n,) + sub)


if __name__ == "__main__":
    key = jax.random.PRNGKey(0)
    k1, k2, k3, k4, k5, k6 = jax.random.split(key, 6)

    def ref_segment_sum(x, idx, n):
        M = x.shape[0]
        flat = jax.ops.segment_sum(x.reshape(M, -1).astype(jnp.float32),
                                   idx, num_segments=n)
        return flat.reshape((n,) + x.shape[1:])

    # --- case 1: f32, (64, 4, 8), single-tile grid, resident idx ---------------
    M, n, sub = 64, 16, (4, 8)
    x = jax.random.normal(k1, (M,) + sub, dtype=jnp.float32)
    idx = jax.random.randint(k2, (M,), 0, n, dtype=jnp.int32)
    out = jax.block_until_ready(reducer_forward(x, idx, n))
    ref = ref_segment_sum(x, idx, n)
    assert out.shape == (n,) + sub and out.dtype == x.dtype
    np.testing.assert_allclose(np.asarray(out), np.asarray(ref), rtol=5e-4, atol=5e-4)

    # --- case 2: f32, ragged M, streamed (non-resident) idx path ----------------
    M2, n2, sub2 = 50, 24, (8,)
    x2 = jax.random.normal(k3, (M2,) + sub2, dtype=jnp.float32)
    idx2 = jax.random.randint(k4, (M2,), 0, n2, dtype=jnp.int32)
    out2 = jax.block_until_ready(
        reducer_forward(x2, idx2, n2, max_resident_idx_bytes=0))
    ref2 = ref_segment_sum(x2, idx2, n2)
    np.testing.assert_allclose(np.asarray(out2), np.asarray(ref2), rtol=5e-4, atol=5e-4)

    # --- case 3: bf16 input (bf16 MXU operands, f32 scratch accumulator) --------
    xb = x.astype(jnp.bfloat16)
    outb = jax.block_until_ready(reducer_forward(xb, idx, n))
    refb = ref_segment_sum(xb.astype(jnp.float32), idx, n)
    assert outb.dtype == jnp.bfloat16
    np.testing.assert_allclose(np.asarray(outb, dtype=np.float32),
                               np.asarray(refb), rtol=2e-2, atol=2e-2)

    # --- case 4: multi-tile grid (grid_n=2, grid_d=2, grid_m=2, ragged M) -------
    M4, n4, sub4 = 200, 300, (16, 16)
    x4 = jax.random.normal(k5, (M4,) + sub4, dtype=jnp.float32)
    idx4 = jax.random.randint(k6, (M4,), 0, n4, dtype=jnp.int32)
    out4 = jax.block_until_ready(
        reducer_forward(x4, idx4, n4, tile_m=128, tile_d=128, tile_n=256))
    ref4 = ref_segment_sum(x4, idx4, n4)
    np.testing.assert_allclose(np.asarray(out4), np.asarray(ref4), rtol=5e-4, atol=5e-4)

    print("KERNEL_OK")
</pallas_src>

<mosaic_0001>
module attributes {stable_mosaic.version = 11 : i64} {
  func.func @kernel(%arg0: i32, %arg1: i32, %arg2: i32, %arg3: memref<1x128xi32, #tpu.memory_space<vmem>>, %arg4: memref<128x128xf32, #tpu.memory_space<vmem>>, %arg5: memref<256x128xf32, #tpu.memory_space<vmem>>) attributes {dimension_semantics = [#tpu.dimension_semantics<parallel>, #tpu.dimension_semantics<parallel>, #tpu.dimension_semantics<arbitrary>], iteration_bounds = array<i64: 1, 1, 1>, scalar_prefetch = 0 : i64, scratch_operands = 0 : i64, tpu.core_type = #tpu.core_type<tc>, window_params = [{pipeline_mode = #tpu.pipeline_mode<synchronous>, transform_indices = @transform_0, window_bounds = array<i64: 1, 128>}, {transform_indices = @transform_1, window_bounds = array<i64: 128, 128>}, {transform_indices = @transform_2, window_bounds = array<i64: 256, 128>}]} {
    %c128_i32 = arith.constant 128 : i32
    %0 = arith.muli %arg2, %c128_i32 : i32
    %1 = tpu.assume_multiple %0, 128 : i32
    %c0 = arith.constant 0 : index
    %2 = arith.index_cast %1 : i32 to index
    %3 = vector.load %arg3[%c0, %2] : memref<1x128xi32, #tpu.memory_space<vmem>>, vector<1x128xi32>
    %c256_i32 = arith.constant 256 : i32
    %4 = arith.muli %arg0, %c256_i32 : i32
    %5 = vector.broadcast %4 : i32 to vector<1x128xi32>
    %6 = arith.subi %3, %5 : vector<1x128xi32>
    %7 = tpu.iota {dimensions = array<i32: 0>} : vector<256x128xi32>
    %8 = vector.broadcast %6 : vector<1x128xi32> to vector<256x128xi32>
    %9 = arith.cmpi eq, %7, %8 : vector<256x128xi32>
    %10 = arith.extui %9 : vector<256x128xi1> to vector<256x128xi32>
    %11 = arith.sitofp %10 : vector<256x128xi32> to vector<256x128xf32>
    %12 = arith.truncf %11 : vector<256x128xf32> to vector<256x128xbf16>
    %c0_0 = arith.constant 0 : index
    %c0_1 = arith.constant 0 : index
    %13 = vector.load %arg4[%c0_0, %c0_1] : memref<128x128xf32, #tpu.memory_space<vmem>>, vector<128x128xf32>
    %14 = tpu.iota {dimensions = array<i32: 0>} : vector<128x1xi32>
    %c128_i32_2 = arith.constant 128 : i32
    %15 = arith.muli %arg2, %c128_i32_2 : i32
    %16 = vector.broadcast %15 : i32 to vector<128x1xi32>
    %17 = arith.addi %14, %16 : vector<128x1xi32>
    %c64_i32 = arith.constant 64 : i32
    %18 = vector.broadcast %c64_i32 : i32 to vector<128x1xi32>
    %19 = arith.cmpi slt, %17, %18 : vector<128x1xi32>
    %cst = arith.constant 0.000000e+00 : f32
    %20 = vector.broadcast %cst : f32 to vector<128x128xf32>
    %21 = vector.shape_cast %19 : vector<128x1xi1> to vector<128x1xi1>
    %22 = vector.broadcast %21 : vector<128x1xi1> to vector<128x128xi1>
    %23 = arith.select %22, %13, %20 : vector<128x128xi1>, vector<128x128xf32>
    %24 = arith.truncf %23 : vector<128x128xf32> to vector<128x128xbf16>
    %25 = arith.extf %24 : vector<128x128xbf16> to vector<128x128xf32>
    %26 = arith.subf %23, %25 : vector<128x128xf32>
    %27 = arith.truncf %26 : vector<128x128xf32> to vector<128x128xbf16>
    %cst_3 = arith.constant dense<0.000000e+00> : vector<256x128xf32>
    %28 = tpu.matmul %12, %24, %cst_3 {dimension_numbers = #tpu.dot_dimension_numbers<[1], [0], [0], [1], [0, 0, 1, 1], [], []>} : vector<256x128xbf16>, vector<128x128xbf16>, vector<256x128xf32> -> vector<256x128xf32>
    %cst_4 = arith.constant dense<0.000000e+00> : vector<256x128xf32>
    %29 = tpu.matmul %12, %27, %cst_4 {dimension_numbers = #tpu.dot_dimension_numbers<[1], [0], [0], [1], [0, 0, 1, 1], [], []>} : vector<256x128xbf16>, vector<128x128xbf16>, vector<256x128xf32> -> vector<256x128xf32>
    %30 = arith.addf %28, %29 : vector<256x128xf32>
    %c0_i32 = arith.constant 0 : i32
    %31 = arith.cmpi eq, %arg2, %c0_i32 : i32
    %32 = arith.extui %31 : i1 to i32
    %c0_i32_5 = arith.constant 0 : i32
    %33 = arith.cmpi ne, %32, %c0_i32_5 : i32
    scf.if %33 {
      %c0_8 = arith.constant 0 : index
      %c0_9 = arith.constant 0 : index
      %37 = vector.load %arg5[%c0_8, %c0_9] : memref<256x128xf32, #tpu.memory_space<vmem>>, vector<256x128xf32>
      tpu.vector_store %arg5[%c0_8, %c0_9], %30 {strides = array<i32>} : memref<256x128xf32, #tpu.memory_space<vmem>>, vector<256x128xf32>,
    } else {
    }
    %c0_i32_6 = arith.constant 0 : i32
    %34 = arith.cmpi sgt, %arg2, %c0_i32_6 : i32
    %35 = arith.extui %34 : i1 to i32
    %c0_i32_7 = arith.constant 0 : i32
    %36 = arith.cmpi ne, %35, %c0_i32_7 : i32
    scf.if %36 {
      %c0_8 = arith.constant 0 : index
      %c0_9 = arith.constant 0 : index
      %37 = vector.load %arg5[%c0_8, %c0_9] : memref<256x128xf32, #tpu.memory_space<vmem>>, vector<256x128xf32>
      %38 = arith.addf %37, %30 : vector<256x128xf32>
      %c0_10 = arith.constant 0 : index
      %c0_11 = arith.constant 0 : index
      %39 = vector.load %arg5[%c0_10, %c0_11] : memref<256x128xf32, #tpu.memory_space<vmem>>, vector<256x128xf32>
      tpu.vector_store %arg5[%c0_10, %c0_11], %38 {strides = array<i32>} : memref<256x128xf32, #tpu.memory_space<vmem>>, vector<256x128xf32>,
    } else {
    }
    return
  }
  func.func @transform_0(%arg0: i32, %arg1: i32, %arg2: i32) -> (i32, i32) {
    %c0_i32 = arith.constant 0 : i32
    %c0_i32_0 = arith.constant 0 : i32
    %c0_i32_1 = arith.constant 0 : i32
    return %c0_i32, %c0_i32_0 : i32, i32
  }
  func.func @transform_1(%arg0: i32, %arg1: i32, %arg2: i32) -> (i32, i32) {
    %c0_i32 = arith.constant 0 : i32
    return %arg2, %arg1 : i32, i32
  }
  func.func @transform_2(%arg0: i32, %arg1: i32, %arg2: i32) -> (i32, i32) {
    %c0_i32 = arith.constant 0 : i32
    return %arg0, %arg1 : i32, i32
  }
}

</mosaic_0001>

<llo_original>
// kernel: reducer_forward.1
$region0: #{reducer_forward.1}
  #allocation0 [shape = 'u32[]', space=smem, size = 0x4, offset = 0x4, fixed_abs, tag = 'smem constant byte address 0x4 - core index']
  #allocation1 [shape = 'u32[72,128]{1,0:T(1,128)}', space=vmem, size = 0x9000, scoped, tag = 'internal scratch']
  %s0 = inlined_call_operand.vmem [shape: s32[1,128], index: 0, kind: input, shape index: {}]
  %s1 = inlined_call_operand.vmem [shape: f32[64,128], index: 1, kind: input, shape index: {}]
  %s2 = inlined_call_operand.vmem [shape: f32[256,128], index: 2, kind: output, shape index: {}]
  %s3 = sld [smem:[#allocation0]]
  $region26: #{reducer_forward.1} parent=0
    _
  %s5 = ssub.s32 1, %s3
  %s6 = scalar_select 0, %s5, %s3
  // Predicated region
  $region2: #{reducer_forward.1} parent=0 // pred_check
    _
  $region3: #{reducer_forward.1} parent=0 // pred_check_branch
    %8 = sbr.rel (0) target = $region5
  $region4: #{reducer_forward.1} parent=0 // pred_region
    _
  $region5: #{reducer_forward.1} parent=0 // pred_fallthru
    _
  // Predicated region
  $region6: #{reducer_forward.1} parent=0 // pred_check
    _
  $region7: #{reducer_forward.1} parent=0 // pred_check_branch
    %10 = sbr.rel (0) target = $region9
  $region8: #{reducer_forward.1} parent=0 // pred_region
    _
  $region9: #{reducer_forward.1} parent=0 // pred_fallthru
    _
  %s11 = smul.u32 0, 128
  %s12 = sshra.s32 %s11, 7
  %s13 = sand.u32 %s11, 127
  %s14 = scalar_lea.vmem %s0, %s12
  %v15 = vld [vmem:[%s14] sm:$0x1]
  %s16 = smul.u32 0, 256
  %v17 = vstv %s16
  %v18 = vsub.s32 %v15, %v17
  %v19 = vlaneseq
  %v20 = vshrl.u32 %v19, 7
  %v21 = vadd.s32 %v20, 8
  %v22 = vadd.s32 %v20, 16
  %v23 = vadd.s32 %v20, 24
  %v24 = vadd.s32 %v20, 32
  %v25 = vadd.s32 %v20, 40
  %v26 = vadd.s32 %v20, 48
  %v27 = vadd.s32 %v20, 56
  %v28 = vadd.s32 %v20, 64
  %v29 = vadd.s32 %v20, 72
  %v30 = vadd.s32 %v20, 80
  %v31 = vadd.s32 %v20, 88
  %v32 = vadd.s32 %v20, 96
  %v33 = vadd.s32 %v20, 104
  %v34 = vadd.s32 %v20, 112
  %v35 = vadd.s32 %v20, 120
  %v36 = vadd.s32 %v20, 128
  %v37 = vadd.s32 %v20, 136
  %v38 = vadd.s32 %v20, 144
  %v39 = vadd.s32 %v20, 152
  %v40 = vadd.s32 %v20, 160
  %v41 = vadd.s32 %v20, 168
  %v42 = vadd.s32 %v20, 176
  %v43 = vadd.s32 %v20, 184
  %v44 = vadd.s32 %v20, 192
  %v45 = vadd.s32 %v20, 200
  %v46 = vadd.s32 %v20, 208
  %v47 = vadd.s32 %v20, 216
  %v48 = vadd.s32 %v20, 224
  %v49 = vadd.s32 %v20, 232
  %v50 = vadd.s32 %v20, 240
  %v51 = vadd.s32 %v20, 248
  %v52 = vperm.slane %v18, 0
  %vm53 = vcmp.eq.s32.totalorder %v20, %v52
  %vm54 = vcmp.eq.s32.totalorder %v21, %v52
  %vm55 = vcmp.eq.s32.totalorder %v22, %v52
  %vm56 = vcmp.eq.s32.totalorder %v23, %v52
  %vm57 = vcmp.eq.s32.totalorder %v24, %v52
  %vm58 = vcmp.eq.s32.totalorder %v25, %v52
  %vm59 = vcmp.eq.s32.totalorder %v26, %v52
  %vm60 = vcmp.eq.s32.totalorder %v27, %v52
  %vm61 = vcmp.eq.s32.totalorder %v28, %v52
  %vm62 = vcmp.eq.s32.totalorder %v29, %v52
  %vm63 = vcmp.eq.s32.totalorder %v30, %v52
  %vm64 = vcmp.eq.s32.totalorder %v31, %v52
  %vm65 = vcmp.eq.s32.totalorder %v32, %v52
  %vm66 = vcmp.eq.s32.totalorder %v33, %v52
  %vm67 = vcmp.eq.s32.totalorder %v34, %v52
  %vm68 = vcmp.eq.s32.totalorder %v35, %v52
  %vm69 = vcmp.eq.s32.totalorder %v36, %v52
  %vm70 = vcmp.eq.s32.totalorder %v37, %v52
  %vm71 = vcmp.eq.s32.totalorder %v38, %v52
  %vm72 = vcmp.eq.s32.totalorder %v39, %v52
  %vm73 = vcmp.eq.s32.totalorder %v40, %v52
  %vm74 = vcmp.eq.s32.totalorder %v41, %v52
  %vm75 = vcmp.eq.s32.totalorder %v42, %v52
  %vm76 = vcmp.eq.s32.totalorder %v43, %v52
  %vm77 = vcmp.eq.s32.totalorder %v44, %v52
  %vm78 = vcmp.eq.s32.totalorder %v45, %v52
  %vm79 = vcmp.eq.s32.totalorder %v46, %v52
  %vm80 = vcmp.eq.s32.totalorder %v47, %v52
  %vm81 = vcmp.eq.s32.totalorder %v48, %v52
  %vm82 = vcmp.eq.s32.totalorder %v49, %v52
  %vm83 = vcmp.eq.s32.totalorder %v50, %v52
  %vm84 = vcmp.eq.s32.totalorder %v51, %v52
  %v85 = vsel %vm53, 1, 0
  %v86 = vsel %vm54, 1, 0
  %v87 = vsel %vm55, 1, 0
  %v88 = vsel %vm56, 1, 0
  %v89 = vsel %vm57, 1, 0
  %v90 = vsel %vm58, 1, 0
  %v91 = vsel %vm59, 1, 0
  %v92 = vsel %vm60, 1, 0
  %v93 = vsel %vm61, 1, 0
  %v94 = vsel %vm62, 1, 0
  %v95 = vsel %vm63, 1, 0
  %v96 = vsel %vm64, 1, 0
  %v97 = vsel %vm65, 1, 0
  %v98 = vsel %vm66, 1, 0
  %v99 = vsel %vm67, 1, 0
  %v100 = vsel %vm68, 1, 0
  %v101 = vsel %vm69, 1, 0
  %v102 = vsel %vm70, 1, 0
  %v103 = vsel %vm71, 1, 0
  %v104 = vsel %vm72, 1, 0
  %v105 = vsel %vm73, 1, 0
  %v106 = vsel %vm74, 1, 0
  %v107 = vsel %vm75, 1, 0
  %v108 = vsel %vm76, 1, 0
  %v109 = vsel %vm77, 1, 0
  %v110 = vsel %vm78, 1, 0
  %v111 = vsel %vm79, 1, 0
  %v112 = vsel %vm80, 1, 0
  %v113 = vsel %vm81, 1, 0
  %v114 = vsel %vm82, 1, 0
  %v115 = vsel %vm83, 1, 0
  %v116 = vsel %vm84, 1, 0
  %v117 = vcvt.s32.f32 %v85
  %v118 = vcvt.s32.f32 %v86
  %v119 = vcvt.s32.f32 %v87
  %v120 = vcvt.s32.f32 %v88
  %v121 = vcvt.s32.f32 %v89
  %v122 = vcvt.s32.f32 %v90
  %v123 = vcvt.s32.f32 %v91
  %v124 = vcvt.s32.f32 %v92
  %v125 = vcvt.s32.f32 %v93
  %v126 = vcvt.s32.f32 %v94
  %v127 = vcvt.s32.f32 %v95
  %v128 = vcvt.s32.f32 %v96
  %v129 = vcvt.s32.f32 %v97
  %v130 = vcvt.s32.f32 %v98
  %v131 = vcvt.s32.f32 %v99
  %v132 = vcvt.s32.f32 %v100
  %v133 = vcvt.s32.f32 %v101
  %v134 = vcvt.s32.f32 %v102
  %v135 = vcvt.s32.f32 %v103
  %v136 = vcvt.s32.f32 %v104
  %v137 = vcvt.s32.f32 %v105
  %v138 = vcvt.s32.f32 %v106
  %v139 = vcvt.s32.f32 %v107
  %v140 = vcvt.s32.f32 %v108
  %v141 = vcvt.s32.f32 %v109
  %v142 = vcvt.s32.f32 %v110
  %v143 = vcvt.s32.f32 %v111
  %v144 = vcvt.s32.f32 %v112
  %v145 = vcvt.s32.f32 %v113
  %v146 = vcvt.s32.f32 %v114
  %v147 = vcvt.s32.f32 %v115
  %v148 = vcvt.s32.f32 %v116
  %v149 = vpack.c.bf16 %v118, %v117
  %v150 = vpack.c.bf16 %v120, %v119
  %v151 = vpack.c.bf16 %v122, %v121
  %v152 = vpack.c.bf16 %v124, %v123
  %v153 = vpack.c.bf16 %v126, %v125
  %v154 = vpack.c.bf16 %v128, %v127
  %v155 = vpack.c.bf16 %v130, %v129
  %v156 = vpack.c.bf16 %v132, %v131
  %v157 = vpack.c.bf16 %v134, %v133
  %v158 = vpack.c.bf16 %v136, %v135
  %v159 = vpack.c.bf16 %v138, %v137
  %v160 = vpack.c.bf16 %v140, %v139
  %v161 = vpack.c.bf16 %v142, %v141
  %v162 = vpack.c.bf16 %v144, %v143
  %v163 = vpack.c.bf16 %v146, %v145
  %v164 = vpack.c.bf16 %v148, %v147
  %v165 = vld [vmem:[%s1] sm:$0xff]
  %v166 = vld [vmem:[%s1 + $0x8] sm:$0xff]
  %v167 = vld [vmem:[%s1 + $0x10] sm:$0xff]
  %v168 = vld [vmem:[%s1 + $0x18] sm:$0xff]
  %v169 = vld [vmem:[%s1 + $0x20] sm:$0xff]
  %v170 = vld [vmem:[%s1 + $0x28] sm:$0xff]
  %v171 = vld [vmem:[%s1 + $0x30] sm:$0xff]
  %v172 = vld [vmem:[%s1 + $0x38] sm:$0xff]
  %v173 = vld [vmem:[%s1 + $0x40] sm:$0xff]
  %v174 = vld [vmem:[%s1 + $0x48] sm:$0xff]
  %v175 = vld [vmem:[%s1 + $0x50] sm:$0xff]
  %v176 = vld [vmem:[%s1 + $0x58] sm:$0xff]
  %v177 = vld [vmem:[%s1 + $0x60] sm:$0xff]
  %v178 = vld [vmem:[%s1 + $0x68] sm:$0xff]
  %v179 = vld [vmem:[%s1 + $0x70] sm:$0xff]
  %v180 = vld [vmem:[%s1 + $0x78] sm:$0xff]
  %v181 = vstv %s11
  %v182 = vadd.s32 %v20, %v181
  %v183 = vadd.s32 %v21, %v181
  %v184 = vadd.s32 %v22, %v181
  %v185 = vadd.s32 %v23, %v181
  %v186 = vadd.s32 %v24, %v181
  %v187 = vadd.s32 %v25, %v181
  %v188 = vadd.s32 %v26, %v181
  %v189 = vadd.s32 %v27, %v181
  %v190 = vadd.s32 %v28, %v181
  %v191 = vadd.s32 %v29, %v181
  %v192 = vadd.s32 %v30, %v181
  %v193 = vadd.s32 %v31, %v181
  %v194 = vadd.s32 %v32, %v181
  %v195 = vadd.s32 %v33, %v181
  %v196 = vadd.s32 %v34, %v181
  %v197 = vadd.s32 %v35, %v181
  %vm198 = vcmp.lt.s32.totalorder %v182, 64
  %vm199 = vcmp.lt.s32.totalorder %v183, 64
  %vm200 = vcmp.lt.s32.totalorder %v184, 64
  %vm201 = vcmp.lt.s32.totalorder %v185, 64
  %vm202 = vcmp.lt.s32.totalorder %v186, 64
  %vm203 = vcmp.lt.s32.totalorder %v187, 64
  %vm204 = vcmp.lt.s32.totalorder %v188, 64
  %vm205 = vcmp.lt.s32.totalorder %v189, 64
  %vm206 = vcmp.lt.s32.totalorder %v190, 64
  %vm207 = vcmp.lt.s32.totalorder %v191, 64
  %vm208 = vcmp.lt.s32.totalorder %v192, 64
  %vm209 = vcmp.lt.s32.totalorder %v193, 64
  %vm210 = vcmp.lt.s32.totalorder %v194, 64
  %vm211 = vcmp.lt.s32.totalorder %v195, 64
  %vm212 = vcmp.lt.s32.totalorder %v196, 64
  %vm213 = vcmp.lt.s32.totalorder %v197, 64
  %v214 = vsel %vm198, 1, 0
  %v215 = vsel %vm199, 1, 0
  %v216 = vsel %vm200, 1, 0
  %v217 = vsel %vm201, 1, 0
  %v218 = vsel %vm202, 1, 0
  %v219 = vsel %vm203, 1, 0
  %v220 = vsel %vm204, 1, 0
  %v221 = vsel %vm205, 1, 0
  %v222 = vsel %vm206, 1, 0
  %v223 = vsel %vm207, 1, 0
  %v224 = vsel %vm208, 1, 0
  %v225 = vsel %vm209, 1, 0
  %v226 = vsel %vm210, 1, 0
  %v227 = vsel %vm211, 1, 0
  %v228 = vsel %vm212, 1, 0
  %v229 = vsel %vm213, 1, 0
  %vm230 = vcmp.eq.s32.totalorder %v214, 1
  %vm231 = vcmp.eq.s32.totalorder %v215, 1
  %vm232 = vcmp.eq.s32.totalorder %v216, 1
  %vm233 = vcmp.eq.s32.totalorder %v217, 1
  %vm234 = vcmp.eq.s32.totalorder %v218, 1
  %vm235 = vcmp.eq.s32.totalorder %v219, 1
  %vm236 = vcmp.eq.s32.totalorder %v220, 1
  %vm237 = vcmp.eq.s32.totalorder %v221, 1
  %vm238 = vcmp.eq.s32.totalorder %v222, 1
  %vm239 = vcmp.eq.s32.totalorder %v223, 1
  %vm240 = vcmp.eq.s32.totalorder %v224, 1
  %vm241 = vcmp.eq.s32.totalorder %v225, 1
  %vm242 = vcmp.eq.s32.totalorder %v226, 1
  %vm243 = vcmp.eq.s32.totalorder %v227, 1
  %vm244 = vcmp.eq.s32.totalorder %v228, 1
  %vm245 = vcmp.eq.s32.totalorder %v229, 1
  %v246 = vsel %vm230, %v165, 0.0
  %v247 = vsel %vm231, %v166, 0.0
  %v248 = vsel %vm232, %v167, 0.0
  %v249 = vsel %vm233, %v168, 0.0
  %v250 = vsel %vm234, %v169, 0.0
  %v251 = vsel %vm235, %v170, 0.0
  %v252 = vsel %vm236, %v171, 0.0
  %v253 = vsel %vm237, %v172, 0.0
  %v254 = vsel %vm238, %v173, 0.0
  %v255 = vsel %vm239, %v174, 0.0
  %v256 = vsel %vm240, %v175, 0.0
  %v257 = vsel %vm241, %v176, 0.0
  %v258 = vsel %vm242, %v177, 0.0
  %v259 = vsel %vm243, %v178, 0.0
  %v260 = vsel %vm244, %v179, 0.0
  %v261 = vsel %vm245, %v180, 0.0
  %v262 = vpack.c.bf16 %v246, %v246
  %v263 = vpack.c.bf16 %v247, %v247
  %v264 = vpack.c.bf16 %v248, %v248
  %v265 = vpack.c.bf16 %v249, %v249
  %v266 = vpack.c.bf16 %v250, %v250
  %v267 = vpack.c.bf16 %v251, %v251
  %v268 = vpack.c.bf16 %v252, %v252
  %v269 = vpack.c.bf16 %v253, %v253
  %v270 = vpack.c.bf16 %v254, %v254
  %v271 = vpack.c.bf16 %v255, %v255
  %v272 = vpack.c.bf16 %v256, %v256
  %v273 = vpack.c.bf16 %v257, %v257
  %v274 = vpack.c.bf16 %v258, %v258
  %v275 = vpack.c.bf16 %v259, %v259
  %v276 = vpack.c.bf16 %v260, %v260
  %v277 = vpack.c.bf16 %v261, %v261
  %v278 = vunpack.c.l.bf16 %v262
  %v279 = vunpack.c.l.bf16 %v263
  %v280 = vunpack.c.l.bf16 %v264
  %v281 = vunpack.c.l.bf16 %v265
  %v282 = vunpack.c.l.bf16 %v266
  %v283 = vunpack.c.l.bf16 %v267
  %v284 = vunpack.c.l.bf16 %v268
  %v285 = vunpack.c.l.bf16 %v269
  %v286 = vunpack.c.l.bf16 %v270
  %v287 = vunpack.c.l.bf16 %v271
  %v288 = vunpack.c.l.bf16 %v272
  %v289 = vunpack.c.l.bf16 %v273
  %v290 = vunpack.c.l.bf16 %v274
  %v291 = vunpack.c.l.bf16 %v275
  %v292 = vunpack.c.l.bf16 %v276
  %v293 = vunpack.c.l.bf16 %v277
  %v294 = vsub.f32 %v246, %v278
  %v295 = vsub.f32 %v247, %v279
  %v296 = vsub.f32 %v248, %v280
  %v297 = vsub.f32 %v249, %v281
  %v298 = vsub.f32 %v250, %v282
  %v299 = vsub.f32 %v251, %v283
  %v300 = vsub.f32 %v252, %v284
  %v301 = vsub.f32 %v253, %v285
  %v302 = vsub.f32 %v254, %v286
  %v303 = vsub.f32 %v255, %v287
  %v304 = vsub.f32 %v256, %v288
  %v305 = vsub.f32 %v257, %v289
  %v306 = vsub.f32 %v258, %v290
  %v307 = vsub.f32 %v259, %v291
  %v308 = vsub.f32 %v260, %v292
  %v309 = vsub.f32 %v261, %v293
  %v310 = vpack.c.bf16 %v295, %v294
  %v311 = vpack.c.bf16 %v297, %v296
  %v312 = vpack.c.bf16 %v299, %v298
  %v313 = vpack.c.bf16 %v301, %v300
  %v314 = vpack.c.bf16 %v303, %v302
  %v315 = vpack.c.bf16 %v305, %v304
  %v316 = vpack.c.bf16 %v307, %v306
  %v317 = vpack.c.bf16 %v309, %v308
  %318 = vmatpush.bf16.msra.mxu0 %v317
  %319 = vmatpush.bf16.msra.mxu0 %v316
  %320 = vmatpush.bf16.msra.mxu0 %v315
  %321 = vmatpush.bf16.msra.mxu0 %v314
  %322 = vmatpush.bf16.msra.mxu0 %v313
  %323 = vmatpush.bf16.msra.mxu0 %v312
  %324 = vmatpush.bf16.msra.mxu0 %v311
  %325 = vmatpush.bf16.msra.mxu0 %v310
  %326 = vmatmul.bf16.gmra.mxu0 %v149
  %v327 = vpop.f32.mrf.mxu0
  %v328 = vadd.f32 0.0, %v327
  %v329 = vpop.f32.mrf.mxu0
  %v330 = vadd.f32 0.0, %v329
  %331 = vmatmul.bf16.gmra.mxu0 %v150
  %v332 = vpop.f32.mrf.mxu0
  %v333 = vadd.f32 0.0, %v332
  %v334 = vpop.f32.mrf.mxu0
  %v335 = vadd.f32 0.0, %v334
  %336 = vmatmul.bf16.gmra.mxu0 %v151
  %v337 = vpop.f32.mrf.mxu0
  %v338 = vadd.f32 0.0, %v337
  %v339 = vpop.f32.mrf.mxu0
  %v340 = vadd.f32 0.0, %v339
  %341 = vmatmul.bf16.gmra.mxu0 %v152
  %v342 = vpop.f32.mrf.mxu0
  %v343 = vadd.f32 0.0, %v342
  %v344 = vpop.f32.mrf.mxu0
  %v345 = vadd.f32 0.0, %v344
  %346 = vmatmul.bf16.gmra.mxu0 %v153
  %v347 = vpop.f32.mrf.mxu0
  %v348 = vadd.f32 0.0, %v347
  %v349 = vpop.f32.mrf.mxu0
  %v350 = vadd.f32 0.0, %v349
  %351 = vmatmul.bf16.gmra.mxu0 %v154
  %v352 = vpop.f32.mrf.mxu0
  %v353 = vadd.f32 0.0, %v352
  %v354 = vpop.f32.mrf.mxu0
  %v355 = vadd.f32 0.0, %v354
  %356 = vmatmul.bf16.gmra.mxu0 %v155
  %v357 = vpop.f32.mrf.mxu0
  %v358 = vadd.f32 0.0, %v357
  %v359 = vpop.f32.mrf.mxu0
  %v360 = vadd.f32 0.0, %v359
  %361 = vmatmul.bf16.gmra.mxu0 %v156
  %v362 = vpop.f32.mrf.mxu0
  %v363 = vadd.f32 0.0, %v362
  %v364 = vpop.f32.mrf.mxu0
  %v365 = vadd.f32 0.0, %v364
  %366 = vmatmul.bf16.gmra.mxu0 %v157
  %v367 = vpop.f32.mrf.mxu0
  %v368 = vadd.f32 0.0, %v367
  %v369 = vpop.f32.mrf.mxu0
  %v370 = vadd.f32 0.0, %v369
  %371 = vmatmul.bf16.gmra.mxu0 %v158
  %v372 = vpop.f32.mrf.mxu0
  %v373 = vadd.f32 0.0, %v372
  %v374 = vpop.f32.mrf.mxu0
  %v375 = vadd.f32 0.0, %v374
  %376 = vmatmul.bf16.gmra.mxu0 %v159
  %v377 = vpop.f32.mrf.mxu0
  %v378 = vadd.f32 0.0, %v377
  %v379 = vpop.f32.mrf.mxu0
  %v380 = vadd.f32 0.0, %v379
  %381 = vmatmul.bf16.gmra.mxu0 %v160
  %v382 = vpop.f32.mrf.mxu0
  %v383 = vadd.f32 0.0, %v382
  %v384 = vpop.f32.mrf.mxu0
  %v385 = vadd.f32 0.0, %v384
  %386 = vmatmul.bf16.gmra.mxu0 %v161
  %v387 = vpop.f32.mrf.mxu0
  %v388 = vadd.f32 0.0, %v387
  %v389 = vpop.f32.mrf.mxu0
  %v390 = vadd.f32 0.0, %v389
  %391 = vmatmul.bf16.gmra.mxu0 %v162
  %v392 = vpop.f32.mrf.mxu0
  %v393 = vadd.f32 0.0, %v392
  %v394 = vpop.f32.mrf.mxu0
  %v395 = vadd.f32 0.0, %v394
  %396 = vmatmul.bf16.gmra.mxu0 %v163
  %v397 = vpop.f32.mrf.mxu0
  %v398 = vadd.f32 0.0, %v397
  %v399 = vpop.f32.mrf.mxu0
  %v400 = vadd.f32 0.0, %v399
  %401 = vmatmul.bf16.gmra.mxu0 %v164
  %v402 = vpop.f32.mrf.mxu0
  %v403 = vadd.f32 0.0, %v402
  %v404 = vpop.f32.mrf.mxu0
  %v405 = vadd.f32 0.0, %v404
  %406 = vdwg.mxu0
  %v423 = vunpack.c.l.b16 %v262
  %v424 = vunpack.c.l.b16 %v263
  %v425 = vunpack.c.l.b16 %v264
  %v426 = vunpack.c.l.b16 %v265
  %v427 = vunpack.c.l.b16 %v266
  %v428 = vunpack.c.l.b16 %v267
  %v429 = vunpack.c.l.b16 %v268
  %v430 = vunpack.c.l.b16 %v269
  %v431 = vunpack.c.l.b16 %v270
  %v432 = vunpack.c.l.b16 %v271
  %v433 = vunpack.c.l.b16 %v272
  %v434 = vunpack.c.l.b16 %v273
  %v435 = vunpack.c.l.b16 %v274
  %v436 = vunpack.c.l.b16 %v275
  %v437 = vunpack.c.l.b16 %v276
  %v438 = vunpack.c.l.b16 %v277
  %v439 = vpack.c.b16 %v424, %v423
  %v440 = vpack.c.b16 %v426, %v425
  %v441 = vpack.c.b16 %v428, %v427
  %v442 = vpack.c.b16 %v430, %v429
  %v443 = vpack.c.b16 %v432, %v431
  %v444 = vpack.c.b16 %v434, %v433
  %v445 = vpack.c.b16 %v436, %v435
  %v446 = vpack.c.b16 %v438, %v437
  %455 = vmatpush.bf16.msra.mxu0 %v446
  %456 = vmatpush.bf16.msra.mxu0 %v445
  %457 = vmatpush.bf16.msra.mxu0 %v444
  %458 = vmatpush.bf16.msra.mxu0 %v443
  %459 = vmatpush.bf16.msra.mxu0 %v442
  %460 = vmatpush.bf16.msra.mxu0 %v441
  %461 = vmatpush.bf16.msra.mxu0 %v440
  %462 = vmatpush.bf16.msra.mxu0 %v439
  %463 = vmatmul.bf16.gmra.mxu0 %v149
  %v464 = vpop.f32.mrf.mxu0
  %v465 = vadd.f32 %v328, %v464
  %v466 = vpop.f32.mrf.mxu0
  %v467 = vadd.f32 %v330, %v466
  %468 = vmatmul.bf16.gmra.mxu0 %v150
  %v469 = vpop.f32.mrf.mxu0
  %v470 = vadd.f32 %v333, %v469
  %v471 = vpop.f32.mrf.mxu0
  %v472 = vadd.f32 %v335, %v471
  %473 = vmatmul.bf16.gmra.mxu0 %v151
  %v474 = vpop.f32.mrf.mxu0
  %v475 = vadd.f32 %v338, %v474
  %v476 = vpop.f32.mrf.mxu0
  %v477 = vadd.f32 %v340, %v476
  %478 = vmatmul.bf16.gmra.mxu0 %v152
  %v479 = vpop.f32.mrf.mxu0
  %v480 = vadd.f32 %v343, %v479
  %v481 = vpop.f32.mrf.mxu0
  %v482 = vadd.f32 %v345, %v481
  %483 = vmatmul.bf16.gmra.mxu0 %v153
  %v484 = vpop.f32.mrf.mxu0
  %v485 = vadd.f32 %v348, %v484
  %v486 = vpop.f32.mrf.mxu0
  %v487 = vadd.f32 %v350, %v486
  %488 = vmatmul.bf16.gmra.mxu0 %v154
  %v489 = vpop.f32.mrf.mxu0
  %v490 = vadd.f32 %v353, %v489
  %v491 = vpop.f32.mrf.mxu0
  %v492 = vadd.f32 %v355, %v491
  %493 = vmatmul.bf16.gmra.mxu0 %v155
  %v494 = vpop.f32.mrf.mxu0
  %v495 = vadd.f32 %v358, %v494
  %v496 = vpop.f32.mrf.mxu0
  %v497 = vadd.f32 %v360, %v496
  %498 = vmatmul.bf16.gmra.mxu0 %v156
  %v499 = vpop.f32.mrf.mxu0
  %v500 = vadd.f32 %v363, %v499
  %v501 = vpop.f32.mrf.mxu0
  %v502 = vadd.f32 %v365, %v501
  %503 = vmatmul.bf16.gmra.mxu0 %v157
  %v504 = vpop.f32.mrf.mxu0
  %v505 = vadd.f32 %v368, %v504
  %v506 = vpop.f32.mrf.mxu0
  %v507 = vadd.f32 %v370, %v506
  %508 = vmatmul.bf16.gmra.mxu0 %v158
  %v509 = vpop.f32.mrf.mxu0
  %v510 = vadd.f32 %v373, %v509
  %v511 = vpop.f32.mrf.mxu0
  %v512 = vadd.f32 %v375, %v511
  %513 = vmatmul.bf16.gmra.mxu0 %v159
  %v514 = vpop.f32.mrf.mxu0
  %v515 = vadd.f32 %v378, %v514
  %v516 = vpop.f32.mrf.mxu0
  %v517 = vadd.f32 %v380, %v516
  %518 = vmatmul.bf16.gmra.mxu0 %v160
  %v519 = vpop.f32.mrf.mxu0
  %v520 = vadd.f32 %v383, %v519
  %v521 = vpop.f32.mrf.mxu0
  %v522 = vadd.f32 %v385, %v521
  %523 = vmatmul.bf16.gmra.mxu0 %v161
  %v524 = vpop.f32.mrf.mxu0
  %v525 = vadd.f32 %v388, %v524
  %v526 = vpop.f32.mrf.mxu0
  %v527 = vadd.f32 %v390, %v526
  %528 = vmatmul.bf16.gmra.mxu0 %v162
  %v529 = vpop.f32.mrf.mxu0
  %v530 = vadd.f32 %v393, %v529
  %v531 = vpop.f32.mrf.mxu0
  %v532 = vadd.f32 %v395, %v531
  %533 = vmatmul.bf16.gmra.mxu0 %v163
  %v534 = vpop.f32.mrf.mxu0
  %v535 = vadd.f32 %v398, %v534
  %v536 = vpop.f32.mrf.mxu0
  %v537 = vadd.f32 %v400, %v536
  %538 = vmatmul.bf16.gmra.mxu0 %v164
  %v539 = vpop.f32.mrf.mxu0
  %v540 = vadd.f32 %v403, %v539
  %v541 = vpop.f32.mrf.mxu0
  %v542 = vadd.f32 %v405, %v541
  %543 = vdwg.mxu0
  %p544 = scmp.eq.s32.totalorder 0, 0
  // Predicated region
  $region10: #{reducer_forward.1} parent=0 // pred_check
    %p545 = pneg %p544
  $region11: #{reducer_forward.1} parent=0 // pred_check_branch
    %547 = sbr.rel (%p545) target = $region13
  $region12: #{reducer_forward.1} parent=0 // pred_region
    %548 = vst [vmem:[%s2] sm:$0xff] %v465
    %549 = vst [vmem:[%s2 + $0x8] sm:$0xff] %v467
    %550 = vst [vmem:[%s2 + $0x10] sm:$0xff] %v470
    %551 = vst [vmem:[%s2 + $0x18] sm:$0xff] %v472
    %552 = vst [vmem:[%s2 + $0x20] sm:$0xff] %v475
    %553 = vst [vmem:[%s2 + $0x28] sm:$0xff] %v477
    %554 = vst [vmem:[%s2 + $0x30] sm:$0xff] %v480
    %555 = vst [vmem:[%s2 + $0x38] sm:$0xff] %v482
    %556 = vst [vmem:[%s2 + $0x40] sm:$0xff] %v485
    %557 = vst [vmem:[%s2 + $0x48] sm:$0xff] %v487
    %558 = vst [vmem:[%s2 + $0x50] sm:$0xff] %v490
    %559 = vst [vmem:[%s2 + $0x58] sm:$0xff] %v492
    %560 = vst [vmem:[%s2 + $0x60] sm:$0xff] %v495
    %561 = vst [vmem:[%s2 + $0x68] sm:$0xff] %v497
    %562 = vst [vmem:[%s2 + $0x70] sm:$0xff] %v500
    %563 = vst [vmem:[%s2 + $0x78] sm:$0xff] %v502
    %564 = vst [vmem:[%s2 + $0x80] sm:$0xff] %v505
    %565 = vst [vmem:[%s2 + $0x88] sm:$0xff] %v507
    %566 = vst [vmem:[%s2 + $0x90] sm:$0xff] %v510
    %567 = vst [vmem:[%s2 + $0x98] sm:$0xff] %v512
    %568 = vst [vmem:[%s2 + $0xa0] sm:$0xff] %v515
    %569 = vst [vmem:[%s2 + $0xa8] sm:$0xff] %v517
    %570 = vst [vmem:[%s2 + $0xb0] sm:$0xff] %v520
    %571 = vst [vmem:[%s2 + $0xb8] sm:$0xff] %v522
    %572 = vst [vmem:[%s2 + $0xc0] sm:$0xff] %v525
    %573 = vst [vmem:[%s2 + $0xc8] sm:$0xff] %v527
    %574 = vst [vmem:[%s2 + $0xd0] sm:$0xff] %v530
    %575 = vst [vmem:[%s2 + $0xd8] sm:$0xff] %v532
    %576 = vst [vmem:[%s2 + $0xe0] sm:$0xff] %v535
    %577 = vst [vmem:[%s2 + $0xe8] sm:$0xff] %v537
    %578 = vst [vmem:[%s2 + $0xf0] sm:$0xff] %v540
    %579 = vst [vmem:[%s2 + $0xf8] sm:$0xff] %v542
  $region13: #{reducer_forward.1} parent=0 // pred_fallthru
    _
  %p580 = scmp.gt.s32.totalorder 0, 0
  // Predicated region
  $region14: #{reducer_forward.1} parent=0 // pred_check
    %p581 = pneg %p580
  $region15: #{reducer_forward.1} parent=0 // pred_check_branch
    %583 = sbr.rel (%p581) target = $region17
  $region16: #{reducer_forward.1} parent=0 // pred_region
    %v584 = vld [vmem:[%s2] sm:$0xff]
    %v585 = vld [vmem:[%s2 + $0x8] sm:$0xff]
    %v586 = vld [vmem:[%s2 + $0x10] sm:$0xff]
    %v587 = vld [vmem:[%s2 + $0x18] sm:$0xff]
    %v588 = vld [vmem:[%s2 + $0x20] sm:$0xff]
    %v589 = vld [vmem:[%s2 + $0x28] sm:$0xff]
    %v590 = vld [vmem:[%s2 + $0x30] sm:$0xff]
    %v591 = vld [vmem:[%s2 + $0x38] sm:$0xff]
    %v592 = vld [vmem:[%s2 + $0x40] sm:$0xff]
    %v593 = vld [vmem:[%s2 + $0x48] sm:$0xff]
    %v594 = vld [vmem:[%s2 + $0x50] sm:$0xff]
    %v595 = vld [vmem:[%s2 + $0x58] sm:$0xff]
    %v596 = vld [vmem:[%s2 + $0x60] sm:$0xff]
    %v597 = vld [vmem:[%s2 + $0x68] sm:$0xff]
    %v598 = vld [vmem:[%s2 + $0x70] sm:$0xff]
    %v599 = vld [vmem:[%s2 + $0x78] sm:$0xff]
    %v600 = vld [vmem:[%s2 + $0x80] sm:$0xff]
    %v601 = vld [vmem:[%s2 + $0x88] sm:$0xff]
    %v602 = vld [vmem:[%s2 + $0x90] sm:$0xff]
    %v603 = vld [vmem:[%s2 + $0x98] sm:$0xff]
    %v604 = vld [vmem:[%s2 + $0xa0] sm:$0xff]
    %v605 = vld [vmem:[%s2 + $0xa8] sm:$0xff]
    %v606 = vld [vmem:[%s2 + $0xb0] sm:$0xff]
    %v607 = vld [vmem:[%s2 + $0xb8] sm:$0xff]
    %v608 = vld [vmem:[%s2 + $0xc0] sm:$0xff]
    %v609 = vld [vmem:[%s2 + $0xc8] sm:$0xff]
    %v610 = vld [vmem:[%s2 + $0xd0] sm:$0xff]
    %v611 = vld [vmem:[%s2 + $0xd8] sm:$0xff]
    %v612 = vld [vmem:[%s2 + $0xe0] sm:$0xff]
    %v613 = vld [vmem:[%s2 + $0xe8] sm:$0xff]
    %v614 = vld [vmem:[%s2 + $0xf0] sm:$0xff]
    %v615 = vld [vmem:[%s2 + $0xf8] sm:$0xff]
    %v616 = vadd.f32 %v584, %v465
    %v617 = vadd.f32 %v585, %v467
    %v618 = vadd.f32 %v586, %v470
    %v619 = vadd.f32 %v587, %v472
    %v620 = vadd.f32 %v588, %v475
    %v621 = vadd.f32 %v589, %v477
    %v622 = vadd.f32 %v590, %v480
    %v623 = vadd.f32 %v591, %v482
    %v624 = vadd.f32 %v592, %v485
    %v625 = vadd.f32 %v593, %v487
    %v626 = vadd.f32 %v594, %v490
    %v627 = vadd.f32 %v595, %v492
    %v628 = vadd.f32 %v596, %v495
    %v629 = vadd.f32 %v597, %v497
    %v630 = vadd.f32 %v598, %v500
    %v631 = vadd.f32 %v599, %v502
    %v632 = vadd.f32 %v600, %v505
    %v633 = vadd.f32 %v601, %v507
    %v634 = vadd.f32 %v602, %v510
    %v635 = vadd.f32 %v603, %v512
    %v636 = vadd.f32 %v604, %v515
    %v637 = vadd.f32 %v605, %v517
    %v638 = vadd.f32 %v606, %v520
    %v639 = vadd.f32 %v607, %v522
    %v640 = vadd.f32 %v608, %v525
    %v641 = vadd.f32 %v609, %v527
    %v642 = vadd.f32 %v610, %v530
    %v643 = vadd.f32 %v611, %v532
    %v644 = vadd.f32 %v612, %v535
    %v645 = vadd.f32 %v613, %v537
    %v646 = vadd.f32 %v614, %v540
    %v647 = vadd.f32 %v615, %v542
    %648 = vst [vmem:[%s2] sm:$0xff] %v616
    %649 = vst [vmem:[%s2 + $0x8] sm:$0xff] %v617
    %650 = vst [vmem:[%s2 + $0x10] sm:$0xff] %v618
    %651 = vst [vmem:[%s2 + $0x18] sm:$0xff] %v619
    %652 = vst [vmem:[%s2 + $0x20] sm:$0xff] %v620
    %653 = vst [vmem:[%s2 + $0x28] sm:$0xff] %v621
    %654 = vst [vmem:[%s2 + $0x30] sm:$0xff] %v622
    %655 = vst [vmem:[%s2 + $0x38] sm:$0xff] %v623
    %656 = vst [vmem:[%s2 + $0x40] sm:$0xff] %v624
    %657 = vst [vmem:[%s2 + $0x48] sm:$0xff] %v625
    %658 = vst [vmem:[%s2 + $0x50] sm:$0xff] %v626
    %659 = vst [vmem:[%s2 + $0x58] sm:$0xff] %v627
    %660 = vst [vmem:[%s2 + $0x60] sm:$0xff] %v628
    %661 = vst [vmem:[%s2 + $0x68] sm:$0xff] %v629
    %662 = vst [vmem:[%s2 + $0x70] sm:$0xff] %v630
    %663 = vst [vmem:[%s2 + $0x78] sm:$0xff] %v631
    %664 = vst [vmem:[%s2 + $0x80] sm:$0xff] %v632
    %665 = vst [vmem:[%s2 + $0x88] sm:$0xff] %v633
    %666 = vst [vmem:[%s2 + $0x90] sm:$0xff] %v634
    %667 = vst [vmem:[%s2 + $0x98] sm:$0xff] %v635
    %668 = vst [vmem:[%s2 + $0xa0] sm:$0xff] %v636
    %669 = vst [vmem:[%s2 + $0xa8] sm:$0xff] %v637
    %670 = vst [vmem:[%s2 + $0xb0] sm:$0xff] %v638
    %671 = vst [vmem:[%s2 + $0xb8] sm:$0xff] %v639
    %672 = vst [vmem:[%s2 + $0xc0] sm:$0xff] %v640
    %673 = vst [vmem:[%s2 + $0xc8] sm:$0xff] %v641
    %674 = vst [vmem:[%s2 + $0xd0] sm:$0xff] %v642
    %675 = vst [vmem:[%s2 + $0xd8] sm:$0xff] %v643
    %676 = vst [vmem:[%s2 + $0xe0] sm:$0xff] %v644
    %677 = vst [vmem:[%s2 + $0xe8] sm:$0xff] %v645
    %678 = vst [vmem:[%s2 + $0xf0] sm:$0xff] %v646
    %679 = vst [vmem:[%s2 + $0xf8] sm:$0xff] %v647
  $region17: #{reducer_forward.1} parent=0 // pred_fallthru
    _
  // Predicated region
  $region18: #{reducer_forward.1} parent=0 // pred_check
    _
  $region19: #{reducer_forward.1} parent=0 // pred_check_branch
    %681 = sbr.rel (0) target = $region21
  $region20: #{reducer_forward.1} parent=0 // pred_region
    _
  $region21: #{reducer_forward.1} parent=0 // pred_fallthru
    _
  // Predicated region
  $region22: #{reducer_forward.1} parent=0 // pred_check
    _
  $region23: #{reducer_forward.1} parent=0 // pred_check_branch
    %683 = sbr.rel (0) target = $region25
  $region24: #{reducer_forward.1} parent=0 // pred_region
    _
  $region25: #{reducer_forward.1} parent=0 // pred_fallthru
    _

</llo_original>
